<compile_context>
chip_gen: v7x
topology: tpu7x:2x2x1
jax: 0.10.0
libtpu: 0.0.40
codegen_flags: <defaults>
</compile_context>

<pallas_src>
import functools

import jax
import jax.numpy as jnp
from jax import lax
from jax.experimental import pallas as pl
from jax.experimental.pallas import tpu as pltpu

C = 8          # Segmenter.channels
L = 100        # Segmenter.numSkipConvLayers
BN_EPS = 1e-5  # nn.BatchNorm2d default eps


def _segmenter_kernel(x_ref, bm_ref, wf_ref, bf_ref, w1_ref, b1_ref,
                      g_ref, bt_ref, w2_ref, b2_ref, wl_ref, bl_ref,
                      o_ref, *, n, hp, wp):
    m = n * hp * wp
    inv_m = 1.0 / float(m)

    # Border masks, shape (1, m): True where the pixel lies on that border.
    # Computed once, reused by all 200 convolutions.
    m_w0 = bm_ref[0:1, :] > 0.5   # w == 0
    m_wl = bm_ref[1:2, :] > 0.5   # w == wp-1
    m_h0 = bm_ref[2:3, :] > 0.5   # h == 0
    m_hl = bm_ref[3:4, :] > 0.5   # h == hp-1

    def shift(v, off):
        # Circular shift along the flattened pixel (lane) axis:
        #   out[:, i] = v[:, (i + off) % m]     (off is a static Python int)
        off = off % m
        if off == 0:
            return v
        return jnp.concatenate([v[:, off:], v[:, :off]], axis=1)

    def taps9(v, reflect):
        # The 9 neighbor maps of v (rows, m) stacked as (9*rows, m) in tap
        # order t = 3*dy + dx (dy=0: row above, dx=0: column to the left).
        # Border masks both apply the reflect/zero padding rule AND kill any
        # cross-row / cross-image bleed introduced by the circular shifts.
        wm1 = shift(v, -1)   # value at (h, w-1)
        wp1 = shift(v, +1)   # value at (h, w+1)
        if reflect:          # reflect pad: col -1 -> 1, col wp -> wp-2
            left = jnp.where(m_w0, wp1, wm1)
            right = jnp.where(m_wl, wm1, wp1)
        else:                # zero pad
            left = jnp.where(m_w0, 0.0, wm1)
            right = jnp.where(m_wl, 0.0, wp1)
        cols = []
        for hv in (left, v, right):
            above = shift(hv, -wp)   # value at (h-1, .)
            below = shift(hv, +wp)   # value at (h+1, .)
            if reflect:              # row -1 -> 1, row hp -> hp-2
                up = jnp.where(m_h0, below, above)
                down = jnp.where(m_hl, above, below)
            else:
                up = jnp.where(m_h0, 0.0, above)
                down = jnp.where(m_hl, 0.0, below)
            cols.append((up, hv, down))
        taps = [cols[0][0], cols[1][0], cols[2][0],   # dy = 0 (row above)
                cols[0][1], cols[1][1], cols[2][1],   # dy = 1 (same row)
                cols[0][2], cols[1][2], cols[2][2]]   # dy = 2 (row below)
        return jnp.concatenate(taps, axis=0)

    def conv3x3(v, w_mat, bias, reflect):
        # One MXU matmul per conv: (Cout, 9*Cin) @ (9*Cin, m) + bias.
        cols = taps9(v, reflect)
        return jnp.dot(w_mat, cols, preferred_element_type=jnp.float32) + bias

    # ---- conv_first: 1 -> C channels, 3x3, zero padding.
    feat0 = conv3x3(x_ref[...], wf_ref[...], bf_ref[...], reflect=False)

    # ---- 100 x SkipConv: x + conv2(ReLU(BatchNorm(conv1(x)))), reflect pad.
    def layer(l, xf):
        y = conv3x3(xf, w1_ref[l], b1_ref[l], reflect=True)
        # One-pass batch statistics per channel over (N, H, W).
        mean = jnp.sum(y, axis=1, keepdims=True) * inv_m
        ex2 = jnp.sum(y * y, axis=1, keepdims=True) * inv_m
        var = jnp.maximum(ex2 - mean * mean, 0.0)
        # Fold normalization + affine into one per-channel scale / offset so
        # the (C, m) activation sees a single fused multiply-add + ReLU.
        scale = lax.rsqrt(var + BN_EPS) * g_ref[l]   # (C, 1)
        offs = bt_ref[l] - mean * scale              # (C, 1)
        y = jnp.maximum(y * scale + offs, 0.0)       # BN + ReLU
        z = conv3x3(y, w2_ref[l], b2_ref[l], reflect=True)
        return xf + z

    xf = lax.fori_loop(0, L, layer, feat0)

    # ---- conv_last (1x1, C -> 1) + sigmoid; lane-dense (1, m) output.
    logit = jnp.sum(xf * wl_ref[...], axis=0, keepdims=True) + bl_ref[...]
    o_ref[...] = 1.0 / (1.0 + jnp.exp(-logit))


def _interp_matrix(n_out, n_in):
    # Bilinear interpolation matrix, align_corners=True (UpsamplingBilinear2d).
    if n_in == 1:
        return jnp.ones((n_out, 1), jnp.float32)
    i = jnp.arange(n_out, dtype=jnp.float32)
    src = i * (n_in - 1) / max(n_out - 1, 1)
    i0 = jnp.clip(jnp.floor(src).astype(jnp.int32), 0, n_in - 2)
    frac = src - i0.astype(jnp.float32)
    rows = jnp.arange(n_out)
    a = jnp.zeros((n_out, n_in), jnp.float32)
    a = a.at[rows, i0].add(1.0 - frac)
    a = a.at[rows, i0 + 1].add(frac)
    return a


def _upsample_bilinear_align_corners(x, out_h, out_w):
    # x: (N, C, Hin, Win) -> (N, C, out_h, out_w), align_corners=True.
    ah = _interp_matrix(out_h, x.shape[2])
    aw = _interp_matrix(out_w, x.shape[3])
    return jnp.einsum('hp,ncpq,wq->nchw', ah, x, aw)


def segmenter_forward(x, params):
    """x: (N, 1, H, W) float32, NCHW (PyTorch convention); H, W even."""
    n, cin, h, w = x.shape
    assert cin == 1 and h % 2 == 0 and w % 2 == 0
    hp, wp = h // 2, w // 2
    assert hp >= 2 and wp >= 2   # reflect padding needs >= 2 pixels per side
    m = n * hp * wp

    # AvgPool2d(2) (boundary glue) + flatten to the lane-dense (1, m) layout.
    # TODO(synk): AvgPool2d / bilinear upsample are kept as thin JAX glue at
    # the kernel boundary (strided lane compaction / expansion is not worth a
    # Pallas relayout for these tiny maps).
    xpool = x.reshape(n, 1, hp, 2, wp, 2).mean(axis=(3, 5))
    x_flat = xpool.astype(jnp.float32).reshape(1, m)

    # Static border-indicator masks (rows: w==0, w==wp-1, h==0, h==hp-1).
    ar = jnp.arange(m, dtype=jnp.int32)
    w_id = ar % wp
    h_id = (ar // wp) % hp
    bm = jnp.stack([w_id == 0, w_id == wp - 1, h_id == 0, h_id == hp - 1],
                   axis=0).astype(jnp.float32)

    vmem_spec = pl.BlockSpec(memory_space=pltpu.MemorySpace.VMEM)
    kernel = functools.partial(_segmenter_kernel, n=n, hp=hp, wp=wp)
    out_flat = pl.pallas_call(
        kernel,
        out_shape=jax.ShapeDtypeStruct((1, m), jnp.float32),
        in_specs=[vmem_spec] * 12,
        out_specs=vmem_spec,
        compiler_params=pltpu.CompilerParams(
            vmem_limit_bytes=48 * 1024 * 1024),
    )(x_flat, bm, params["wf"], params["bf"], params["w1"], params["b1"],
      params["gamma"], params["beta"], params["w2"], params["b2"],
      params["wl"], params["bl"])

    out_nchw = out_flat.reshape(n, 1, hp, wp)
    return _upsample_bilinear_align_corners(out_nchw, h, w)


def init_params(key):
    # Deterministic synthetic parameters in the kernel layout:
    #   * 3x3 conv weights: (Cout, 9*Cin) with column t*Cin + ci, t = 3*dy+dx,
    #     i.e. torch_weight.permute(0, 2, 3, 1).reshape(Cout, 9*Cin)
    #     (per-layer weights stacked on a leading L axis).
    #   * biases / BN gamma,beta: (C, 1) column vectors (stacked on L).
    #   * conv_last: weight as a (C, 1) column, bias (1, 1).
    ks = jax.random.split(key, 10)
    p = {}
    p["wf"] = 0.3 * jax.random.normal(ks[0], (C, 9), jnp.float32)            # Conv2d(1,C,3)
    p["bf"] = 0.1 * jax.random.normal(ks[1], (C, 1), jnp.float32)
    p["w1"] = 0.10 * jax.random.normal(ks[2], (L, C, 9 * C), jnp.float32)    # SkipConv.conv1
    p["b1"] = 0.10 * jax.random.normal(ks[3], (L, C, 1), jnp.float32)
    p["gamma"] = 1.0 + 0.1 * jax.random.normal(ks[4], (L, C, 1), jnp.float32)
    p["beta"] = 0.1 * jax.random.normal(ks[5], (L, C, 1), jnp.float32)
    p["w2"] = 0.05 * jax.random.normal(ks[6], (L, C, 9 * C), jnp.float32)    # SkipConv.conv2
    p["b2"] = 0.05 * jax.random.normal(ks[7], (L, C, 1), jnp.float32)
    p["wl"] = 0.2 * jax.random.normal(ks[8], (C, 1), jnp.float32)            # Conv2d(C,1,1)
    p["bl"] = 0.1 * jax.random.normal(ks[9], (1, 1), jnp.float32)
    return p


if __name__ == "__main__":
    key = jax.random.PRNGKey(0)
    kx, kp = jax.random.split(key)
    x = jax.random.normal(kx, (2, 1, 16, 16), jnp.float32)   # NCHW, 1 channel
    params = init_params(kp)

    y = jax.jit(segmenter_forward)(x, params)
    y = jax.block_until_ready(y)

    assert y.shape == x.shape, y.shape
    assert bool(jnp.all(jnp.isfinite(y)))
    assert bool(jnp.all((y >= 0.0) & (y <= 1.0)))  # sigmoid + convex bilinear
    print("KERNEL_OK")
</pallas_src>

<mosaic_0001>
module attributes {stable_mosaic.version = 11 : i64} {
  func.func private @main(%arg0: i32) attributes {dimension_semantics = [#tpu.dimension_semantics<core_parallel>], iteration_bounds = array<i64: 2>, tpu.core_type = #tpu.core_type<sc_scalar_subcore>, window_params = []} {
    return
  }
}

module attributes {stable_mosaic.version = 11 : i64} {
  func.func private @main(%arg0: i32) attributes {dimension_semantics = [#tpu.dimension_semantics<core_parallel>], iteration_bounds = array<i64: 2>, tpu.core_type = #tpu.core_type<sc_scalar_subcore>, window_params = []} {
    return
  }
}

module attributes {stable_mosaic.version = 11 : i64} {
  func.func @_segmenter_kernel(%arg0: memref<1x128xf32, #tpu.memory_space<vmem>>, %arg1: memref<4x128xf32, #tpu.memory_space<vmem>>, %arg2: memref<8x9xf32, #tpu.memory_space<vmem>>, %arg3: memref<8x1xf32, #tpu.memory_space<vmem>>, %arg4: memref<100x8x72xf32, #tpu.memory_space<vmem>>, %arg5: memref<100x8x1xf32, #tpu.memory_space<vmem>>, %arg6: memref<100x8x1xf32, #tpu.memory_space<vmem>>, %arg7: memref<100x8x1xf32, #tpu.memory_space<vmem>>, %arg8: memref<100x8x72xf32, #tpu.memory_space<vmem>>, %arg9: memref<100x8x1xf32, #tpu.memory_space<vmem>>, %arg10: memref<8x1xf32, #tpu.memory_space<vmem>>, %arg11: memref<1x1xf32, #tpu.memory_space<vmem>>, %arg12: memref<1x128xf32, #tpu.memory_space<vmem>>) attributes {dimension_semantics = [], scalar_prefetch = 0 : i64, scratch_operands = 0 : i64, tpu.core_type = #tpu.core_type<tc>} {
    %c0 = arith.constant 0 : index
    %c0_0 = arith.constant 0 : index
    %0 = vector.load %arg1[%c0, %c0_0] : memref<4x128xf32, #tpu.memory_space<vmem>>, vector<1x128xf32>
    %cst = arith.constant 5.000000e-01 : f32
    %1 = vector.broadcast %cst : f32 to vector<1x128xf32>
    %2 = arith.cmpf ogt, %0, %1 : vector<1x128xf32>
    %c1 = arith.constant 1 : index
    %c0_1 = arith.constant 0 : index
    %3 = vector.load %arg1[%c1, %c0_1] : memref<4x128xf32, #tpu.memory_space<vmem>>, vector<1x128xf32>
    %cst_2 = arith.constant 5.000000e-01 : f32
    %4 = vector.broadcast %cst_2 : f32 to vector<1x128xf32>
    %5 = arith.cmpf ogt, %3, %4 : vector<1x128xf32>
    %c2 = arith.constant 2 : index
    %c0_3 = arith.constant 0 : index
    %6 = vector.load %arg1[%c2, %c0_3] : memref<4x128xf32, #tpu.memory_space<vmem>>, vector<1x128xf32>
    %cst_4 = arith.constant 5.000000e-01 : f32
    %7 = vector.broadcast %cst_4 : f32 to vector<1x128xf32>
    %8 = arith.cmpf ogt, %6, %7 : vector<1x128xf32>
    %c3 = arith.constant 3 : index
    %c0_5 = arith.constant 0 : index
    %9 = vector.load %arg1[%c3, %c0_5] : memref<4x128xf32, #tpu.memory_space<vmem>>, vector<1x128xf32>
    %cst_6 = arith.constant 5.000000e-01 : f32
    %10 = vector.broadcast %cst_6 : f32 to vector<1x128xf32>
    %11 = arith.cmpf ogt, %9, %10 : vector<1x128xf32>
    %c0_7 = arith.constant 0 : index
    %c0_8 = arith.constant 0 : index
    %12 = vector.load %arg0[%c0_7, %c0_8] : memref<1x128xf32, #tpu.memory_space<vmem>>, vector<1x128xf32>
    %c0_9 = arith.constant 0 : index
    %c0_10 = arith.constant 0 : index
    %13 = vector.load %arg2[%c0_9, %c0_10] : memref<8x9xf32, #tpu.memory_space<vmem>>, vector<8x9xf32>
    %c0_11 = arith.constant 0 : index
    %c0_12 = arith.constant 0 : index
    %14 = vector.load %arg3[%c0_11, %c0_12] : memref<8x1xf32, #tpu.memory_space<vmem>>, vector<8x1xf32>
    %15 = vector.extract_strided_slice %12 {offsets = [0, 127], sizes = [1, 1], strides = [1, 1]} : vector<1x128xf32> to vector<1x1xf32>
    %16 = vector.extract_strided_slice %12 {offsets = [0, 0], sizes = [1, 127], strides = [1, 1]} : vector<1x128xf32> to vector<1x127xf32>
    %17 = tpu.concatenate %15, %16 in 1 : vector<1x1xf32>, vector<1x127xf32> -> vector<1x128xf32>
    %18 = vector.extract_strided_slice %12 {offsets = [0, 1], sizes = [1, 127], strides = [1, 1]} : vector<1x128xf32> to vector<1x127xf32>
    %19 = vector.extract_strided_slice %12 {offsets = [0, 0], sizes = [1, 1], strides = [1, 1]} : vector<1x128xf32> to vector<1x1xf32>
    %20 = tpu.concatenate %18, %19 in 1 : vector<1x127xf32>, vector<1x1xf32> -> vector<1x128xf32>
    %cst_13 = arith.constant 0.000000e+00 : f32
    %21 = vector.broadcast %cst_13 : f32 to vector<1x128xf32>
    %22 = arith.select %2, %21, %17 : vector<1x128xi1>, vector<1x128xf32>
    %cst_14 = arith.constant 0.000000e+00 : f32
    %23 = vector.broadcast %cst_14 : f32 to vector<1x128xf32>
    %24 = arith.select %5, %23, %20 : vector<1x128xi1>, vector<1x128xf32>
    %25 = vector.extract_strided_slice %22 {offsets = [0, 120], sizes = [1, 8], strides = [1, 1]} : vector<1x128xf32> to vector<1x8xf32>
    %26 = vector.extract_strided_slice %22 {offsets = [0, 0], sizes = [1, 120], strides = [1, 1]} : vector<1x128xf32> to vector<1x120xf32>
    %27 = tpu.concatenate %25, %26 in 1 : vector<1x8xf32>, vector<1x120xf32> -> vector<1x128xf32>
    %28 = vector.extract_strided_slice %22 {offsets = [0, 8], sizes = [1, 120], strides = [1, 1]} : vector<1x128xf32> to vector<1x120xf32>
    %29 = vector.extract_strided_slice %22 {offsets = [0, 0], sizes = [1, 8], strides = [1, 1]} : vector<1x128xf32> to vector<1x8xf32>
    %30 = tpu.concatenate %28, %29 in 1 : vector<1x120xf32>, vector<1x8xf32> -> vector<1x128xf32>
    %cst_15 = arith.constant 0.000000e+00 : f32
    %31 = vector.broadcast %cst_15 : f32 to vector<1x128xf32>
    %32 = arith.select %8, %31, %27 : vector<1x128xi1>, vector<1x128xf32>
    %cst_16 = arith.constant 0.000000e+00 : f32
    %33 = vector.broadcast %cst_16 : f32 to vector<1x128xf32>
    %34 = arith.select %11, %33, %30 : vector<1x128xi1>, vector<1x128xf32>
    %35 = vector.extract_strided_slice %12 {offsets = [0, 120], sizes = [1, 8], strides = [1, 1]} : vector<1x128xf32> to vector<1x8xf32>
    %36 = vector.extract_strided_slice %12 {offsets = [0, 0], sizes = [1, 120], strides = [1, 1]} : vector<1x128xf32> to vector<1x120xf32>
    %37 = tpu.concatenate %35, %36 in 1 : vector<1x8xf32>, vector<1x120xf32> -> vector<1x128xf32>
    %38 = vector.extract_strided_slice %12 {offsets = [0, 8], sizes = [1, 120], strides = [1, 1]} : vector<1x128xf32> to vector<1x120xf32>
    %39 = vector.extract_strided_slice %12 {offsets = [0, 0], sizes = [1, 8], strides = [1, 1]} : vector<1x128xf32> to vector<1x8xf32>
    %40 = tpu.concatenate %38, %39 in 1 : vector<1x120xf32>, vector<1x8xf32> -> vector<1x128xf32>
    %cst_17 = arith.constant 0.000000e+00 : f32
    %41 = vector.broadcast %cst_17 : f32 to vector<1x128xf32>
    %42 = arith.select %8, %41, %37 : vector<1x128xi1>, vector<1x128xf32>
    %cst_18 = arith.constant 0.000000e+00 : f32
    %43 = vector.broadcast %cst_18 : f32 to vector<1x128xf32>
    %44 = arith.select %11, %43, %40 : vector<1x128xi1>, vector<1x128xf32>
    %45 = vector.extract_strided_slice %24 {offsets = [0, 120], sizes = [1, 8], strides = [1, 1]} : vector<1x128xf32> to vector<1x8xf32>
    %46 = vector.extract_strided_slice %24 {offsets = [0, 0], sizes = [1, 120], strides = [1, 1]} : vector<1x128xf32> to vector<1x120xf32>
    %47 = tpu.concatenate %45, %46 in 1 : vector<1x8xf32>, vector<1x120xf32> -> vector<1x128xf32>
    %48 = vector.extract_strided_slice %24 {offsets = [0, 8], sizes = [1, 120], strides = [1, 1]} : vector<1x128xf32> to vector<1x120xf32>
    %49 = vector.extract_strided_slice %24 {offsets = [0, 0], sizes = [1, 8], strides = [1, 1]} : vector<1x128xf32> to vector<1x8xf32>
    %50 = tpu.concatenate %48, %49 in 1 : vector<1x120xf32>, vector<1x8xf32> -> vector<1x128xf32>
    %cst_19 = arith.constant 0.000000e+00 : f32
    %51 = vector.broadcast %cst_19 : f32 to vector<1x128xf32>
    %52 = arith.select %8, %51, %47 : vector<1x128xi1>, vector<1x128xf32>
    %cst_20 = arith.constant 0.000000e+00 : f32
    %53 = vector.broadcast %cst_20 : f32 to vector<1x128xf32>
    %54 = arith.select %11, %53, %50 : vector<1x128xi1>, vector<1x128xf32>
    %55 = tpu.concatenate %32, %42, %52, %22, %12, %24, %34, %44, %54 in 0 : vector<1x128xf32>, vector<1x128xf32>, vector<1x128xf32>, vector<1x128xf32>, vector<1x128xf32>, vector<1x128xf32>, vector<1x128xf32>, vector<1x128xf32>, vector<1x128xf32> -> vector<9x128xf32>
    %cst_21 = arith.constant dense<0.000000e+00> : vector<8x128xf32>
    %56 = tpu.matmul %13, %55, %cst_21 {dimension_numbers = #tpu.dot_dimension_numbers<[1], [0], [0], [1], [0, 0, 1, 1], [], []>} : vector<8x9xf32>, vector<9x128xf32>, vector<8x128xf32> -> vector<8x128xf32>
    %57 = vector.broadcast %14 : vector<8x1xf32> to vector<8x128xf32>
    %58 = arith.addf %56, %57 : vector<8x128xf32>
    %c0_i32 = arith.constant 0 : i32
    %c100_i32 = arith.constant 100 : i32
    %59 = arith.addi %c0_i32, %c100_i32 : i32
    %c1_i32 = arith.constant 1 : i32
    %60 = scf.for %arg13 = %c0_i32 to %59 step %c1_i32 iter_args(%arg14 = %58) -> (vector<8x128xf32>)  : i32 {
      %77 = arith.index_cast %arg13 : i32 to index
      %c0_33 = arith.constant 0 : index
      %c0_34 = arith.constant 0 : index
      %78 = vector.load %arg4[%77, %c0_33, %c0_34] : memref<100x8x72xf32, #tpu.memory_space<vmem>>, vector<1x8x72xf32>
      %79 = vector.shape_cast %78 : vector<1x8x72xf32> to vector<8x72xf32>
      %80 = arith.index_cast %arg13 : i32 to index
      %c0_35 = arith.constant 0 : index
      %c0_36 = arith.constant 0 : index
      %81 = vector.load %arg5[%80, %c0_35, %c0_36] : memref<100x8x1xf32, #tpu.memory_space<vmem>>, vector<1x8x1xf32>
      %82 = vector.shape_cast %81 : vector<1x8x1xf32> to vector<8x1xf32>
      %83 = vector.extract_strided_slice %arg14 {offsets = [0, 127], sizes = [8, 1], strides = [1, 1]} : vector<8x128xf32> to vector<8x1xf32>
      %84 = vector.extract_strided_slice %arg14 {offsets = [0, 0], sizes = [8, 127], strides = [1, 1]} : vector<8x128xf32> to vector<8x127xf32>
      %85 = tpu.concatenate %83, %84 in 1 : vector<8x1xf32>, vector<8x127xf32> -> vector<8x128xf32>
      %86 = vector.extract_strided_slice %arg14 {offsets = [0, 1], sizes = [8, 127], strides = [1, 1]} : vector<8x128xf32> to vector<8x127xf32>
      %87 = vector.extract_strided_slice %arg14 {offsets = [0, 0], sizes = [8, 1], strides = [1, 1]} : vector<8x128xf32> to vector<8x1xf32>
      %88 = tpu.concatenate %86, %87 in 1 : vector<8x127xf32>, vector<8x1xf32> -> vector<8x128xf32>
      %89 = vector.shape_cast %2 : vector<1x128xi1> to vector<1x128xi1>
      %90 = vector.broadcast %89 : vector<1x128xi1> to vector<8x128xi1>
      %91 = arith.select %90, %88, %85 : vector<8x128xi1>, vector<8x128xf32>
      %92 = vector.shape_cast %5 : vector<1x128xi1> to vector<1x128xi1>
      %93 = vector.broadcast %92 : vector<1x128xi1> to vector<8x128xi1>
      %94 = arith.select %93, %85, %88 : vector<8x128xi1>, vector<8x128xf32>
      %95 = vector.extract_strided_slice %91 {offsets = [0, 120], sizes = [8, 8], strides = [1, 1]} : vector<8x128xf32> to vector<8x8xf32>
      %96 = vector.extract_strided_slice %91 {offsets = [0, 0], sizes = [8, 120], strides = [1, 1]} : vector<8x128xf32> to vector<8x120xf32>
      %97 = tpu.concatenate %95, %96 in 1 : vector<8x8xf32>, vector<8x120xf32> -> vector<8x128xf32>
      %98 = vector.extract_strided_slice %91 {offsets = [0, 8], sizes = [8, 120], strides = [1, 1]} : vector<8x128xf32> to vector<8x120xf32>
      %99 = vector.extract_strided_slice %91 {offsets = [0, 0], sizes = [8, 8], strides = [1, 1]} : vector<8x128xf32> to vector<8x8xf32>
      %100 = tpu.concatenate %98, %99 in 1 : vector<8x120xf32>, vector<8x8xf32> -> vector<8x128xf32>
      %101 = vector.shape_cast %8 : vector<1x128xi1> to vector<1x128xi1>
      %102 = vector.broadcast %101 : vector<1x128xi1> to vector<8x128xi1>
      %103 = arith.select %102, %100, %97 : vector<8x128xi1>, vector<8x128xf32>
      %104 = vector.shape_cast %11 : vector<1x128xi1> to vector<1x128xi1>
      %105 = vector.broadcast %104 : vector<1x128xi1> to vector<8x128xi1>
      %106 = arith.select %105, %97, %100 : vector<8x128xi1>, vector<8x128xf32>
      %107 = vector.extract_strided_slice %arg14 {offsets = [0, 120], sizes = [8, 8], strides = [1, 1]} : vector<8x128xf32> to vector<8x8xf32>
      %108 = vector.extract_strided_slice %arg14 {offsets = [0, 0], sizes = [8, 120], strides = [1, 1]} : vector<8x128xf32> to vector<8x120xf32>
      %109 = tpu.concatenate %107, %108 in 1 : vector<8x8xf32>, vector<8x120xf32> -> vector<8x128xf32>
      %110 = vector.extract_strided_slice %arg14 {offsets = [0, 8], sizes = [8, 120], strides = [1, 1]} : vector<8x128xf32> to vector<8x120xf32>
      %111 = vector.extract_strided_slice %arg14 {offsets = [0, 0], sizes = [8, 8], strides = [1, 1]} : vector<8x128xf32> to vector<8x8xf32>
      %112 = tpu.concatenate %110, %111 in 1 : vector<8x120xf32>, vector<8x8xf32> -> vector<8x128xf32>
      %113 = vector.shape_cast %8 : vector<1x128xi1> to vector<1x128xi1>
      %114 = vector.broadcast %113 : vector<1x128xi1> to vector<8x128xi1>
      %115 = arith.select %114, %112, %109 : vector<8x128xi1>, vector<8x128xf32>
      %116 = vector.shape_cast %11 : vector<1x128xi1> to vector<1x128xi1>
      %117 = vector.broadcast %116 : vector<1x128xi1> to vector<8x128xi1>
      %118 = arith.select %117, %109, %112 : vector<8x128xi1>, vector<8x128xf32>
      %119 = vector.extract_strided_slice %94 {offsets = [0, 120], sizes = [8, 8], strides = [1, 1]} : vector<8x128xf32> to vector<8x8xf32>
      %120 = vector.extract_strided_slice %94 {offsets = [0, 0], sizes = [8, 120], strides = [1, 1]} : vector<8x128xf32> to vector<8x120xf32>
      %121 = tpu.concatenate %119, %120 in 1 : vector<8x8xf32>, vector<8x120xf32> -> vector<8x128xf32>
      %122 = vector.extract_strided_slice %94 {offsets = [0, 8], sizes = [8, 120], strides = [1, 1]} : vector<8x128xf32> to vector<8x120xf32>
      %123 = vector.extract_strided_slice %94 {offsets = [0, 0], sizes = [8, 8], strides = [1, 1]} : vector<8x128xf32> to vector<8x8xf32>
      %124 = tpu.concatenate %122, %123 in 1 : vector<8x120xf32>, vector<8x8xf32> -> vector<8x128xf32>
      %125 = vector.shape_cast %8 : vector<1x128xi1> to vector<1x128xi1>
      %126 = vector.broadcast %125 : vector<1x128xi1> to vector<8x128xi1>
      %127 = arith.select %126, %124, %121 : vector<8x128xi1>, vector<8x128xf32>
      %128 = vector.shape_cast %11 : vector<1x128xi1> to vector<1x128xi1>
      %129 = vector.broadcast %128 : vector<1x128xi1> to vector<8x128xi1>
      %130 = arith.select %129, %121, %124 : vector<8x128xi1>, vector<8x128xf32>
      %131 = tpu.concatenate %103, %115, %127, %91, %arg14, %94, %106, %118, %130 in 0 : vector<8x128xf32>, vector<8x128xf32>, vector<8x128xf32>, vector<8x128xf32>, vector<8x128xf32>, vector<8x128xf32>, vector<8x128xf32>, vector<8x128xf32>, vector<8x128xf32> -> vector<72x128xf32>
      %cst_37 = arith.constant dense<0.000000e+00> : vector<8x128xf32>
      %132 = tpu.matmul %79, %131, %cst_37 {dimension_numbers = #tpu.dot_dimension_numbers<[1], [0], [0], [1], [0, 0, 1, 1], [], []>} : vector<8x72xf32>, vector<72x128xf32>, vector<8x128xf32> -> vector<8x128xf32>
      %133 = vector.broadcast %82 : vector<8x1xf32> to vector<8x128xf32>
      %134 = arith.addf %132, %133 : vector<8x128xf32>
      %cst_38 = arith.constant dense<0.000000e+00> : vector<8xf32>
      %135 = vector.multi_reduction <add>, %134, %cst_38 [1] : vector<8x128xf32> to vector<8xf32>
      %136 = vector.shape_cast %135 : vector<8xf32> to vector<8x1xf32>
      %cst_39 = arith.constant 7.812500e-03 : f32
      %137 = vector.broadcast %cst_39 : f32 to vector<8x1xf32>
      %138 = arith.mulf %136, %137 : vector<8x1xf32>
      %139 = arith.mulf %134, %134 : vector<8x128xf32>
      %cst_40 = arith.constant dense<0.000000e+00> : vector<8xf32>
      %140 = vector.multi_reduction <add>, %139, %cst_40 [1] : vector<8x128xf32> to vector<8xf32>
      %141 = vector.shape_cast %140 : vector<8xf32> to vector<8x1xf32>
      %cst_41 = arith.constant 7.812500e-03 : f32
      %142 = vector.broadcast %cst_41 : f32 to vector<8x1xf32>
      %143 = arith.mulf %141, %142 : vector<8x1xf32>
      %144 = arith.mulf %138, %138 : vector<8x1xf32>
      %145 = arith.subf %143, %144 : vector<8x1xf32>
      %cst_42 = arith.constant 0.000000e+00 : f32
      %146 = vector.broadcast %cst_42 : f32 to vector<8x1xf32>
      %147 = arith.maximumf %145, %146 : vector<8x1xf32>
      %cst_43 = arith.constant 9.99999974E-6 : f32
      %148 = vector.broadcast %cst_43 : f32 to vector<8x1xf32>
      %149 = arith.addf %147, %148 : vector<8x1xf32>
      %150 = math.rsqrt %149 : vector<8x1xf32>
      %151 = arith.index_cast %arg13 : i32 to index
      %c0_44 = arith.constant 0 : index
      %c0_45 = arith.constant 0 : index
      %152 = vector.load %arg6[%151, %c0_44, %c0_45] : memref<100x8x1xf32, #tpu.memory_space<vmem>>, vector<1x8x1xf32>
      %153 = vector.shape_cast %152 : vector<1x8x1xf32> to vector<8x1xf32>
      %154 = arith.mulf %150, %153 : vector<8x1xf32>
      %155 = arith.index_cast %arg13 : i32 to index
      %c0_46 = arith.constant 0 : index
      %c0_47 = arith.constant 0 : index
      %156 = vector.load %arg7[%155, %c0_46, %c0_47] : memref<100x8x1xf32, #tpu.memory_space<vmem>>, vector<1x8x1xf32>
      %157 = vector.shape_cast %156 : vector<1x8x1xf32> to vector<8x1xf32>
      %158 = arith.mulf %138, %154 : vector<8x1xf32>
      %159 = arith.subf %157, %158 : vector<8x1xf32>
      %160 = vector.broadcast %154 : vector<8x1xf32> to vector<8x128xf32>
      %161 = arith.mulf %134, %160 : vector<8x128xf32>
      %162 = vector.broadcast %159 : vector<8x1xf32> to vector<8x128xf32>
      %163 = arith.addf %161, %162 : vector<8x128xf32>
      %cst_48 = arith.constant 0.000000e+00 : f32
      %164 = vector.broadcast %cst_48 : f32 to vector<8x128xf32>
      %165 = arith.maximumf %163, %164 : vector<8x128xf32>
      %166 = arith.index_cast %arg13 : i32 to index
      %c0_49 = arith.constant 0 : index
      %c0_50 = arith.constant 0 : index
      %167 = vector.load %arg8[%166, %c0_49, %c0_50] : memref<100x8x72xf32, #tpu.memory_space<vmem>>, vector<1x8x72xf32>
      %168 = vector.shape_cast %167 : vector<1x8x72xf32> to vector<8x72xf32>
      %169 = arith.index_cast %arg13 : i32 to index
      %c0_51 = arith.constant 0 : index
      %c0_52 = arith.constant 0 : index
      %170 = vector.load %arg9[%169, %c0_51, %c0_52] : memref<100x8x1xf32, #tpu.memory_space<vmem>>, vector<1x8x1xf32>
      %171 = vector.shape_cast %170 : vector<1x8x1xf32> to vector<8x1xf32>
      %172 = vector.extract_strided_slice %165 {offsets = [0, 127], sizes = [8, 1], strides = [1, 1]} : vector<8x128xf32> to vector<8x1xf32>
      %173 = vector.extract_strided_slice %165 {offsets = [0, 0], sizes = [8, 127], strides = [1, 1]} : vector<8x128xf32> to vector<8x127xf32>
      %174 = tpu.concatenate %172, %173 in 1 : vector<8x1xf32>, vector<8x127xf32> -> vector<8x128xf32>
      %175 = vector.extract_strided_slice %165 {offsets = [0, 1], sizes = [8, 127], strides = [1, 1]} : vector<8x128xf32> to vector<8x127xf32>
      %176 = vector.extract_strided_slice %165 {offsets = [0, 0], sizes = [8, 1], strides = [1, 1]} : vector<8x128xf32> to vector<8x1xf32>
      %177 = tpu.concatenate %175, %176 in 1 : vector<8x127xf32>, vector<8x1xf32> -> vector<8x128xf32>
      %178 = vector.shape_cast %2 : vector<1x128xi1> to vector<1x128xi1>
      %179 = vector.broadcast %178 : vector<1x128xi1> to vector<8x128xi1>
      %180 = arith.select %179, %177, %174 : vector<8x128xi1>, vector<8x128xf32>
      %181 = vector.shape_cast %5 : vector<1x128xi1> to vector<1x128xi1>
      %182 = vector.broadcast %181 : vector<1x128xi1> to vector<8x128xi1>
      %183 = arith.select %182, %174, %177 : vector<8x128xi1>, vector<8x128xf32>
      %184 = vector.extract_strided_slice %180 {offsets = [0, 120], sizes = [8, 8], strides = [1, 1]} : vector<8x128xf32> to vector<8x8xf32>
      %185 = vector.extract_strided_slice %180 {offsets = [0, 0], sizes = [8, 120], strides = [1, 1]} : vector<8x128xf32> to vector<8x120xf32>
      %186 = tpu.concatenate %184, %185 in 1 : vector<8x8xf32>, vector<8x120xf32> -> vector<8x128xf32>
      %187 = vector.extract_strided_slice %180 {offsets = [0, 8], sizes = [8, 120], strides = [1, 1]} : vector<8x128xf32> to vector<8x120xf32>
      %188 = vector.extract_strided_slice %180 {offsets = [0, 0], sizes = [8, 8], strides = [1, 1]} : vector<8x128xf32> to vector<8x8xf32>
      %189 = tpu.concatenate %187, %188 in 1 : vector<8x120xf32>, vector<8x8xf32> -> vector<8x128xf32>
      %190 = vector.shape_cast %8 : vector<1x128xi1> to vector<1x128xi1>
      %191 = vector.broadcast %190 : vector<1x128xi1> to vector<8x128xi1>
      %192 = arith.select %191, %189, %186 : vector<8x128xi1>, vector<8x128xf32>
      %193 = vector.shape_cast %11 : vector<1x128xi1> to vector<1x128xi1>
      %194 = vector.broadcast %193 : vector<1x128xi1> to vector<8x128xi1>
      %195 = arith.select %194, %186, %189 : vector<8x128xi1>, vector<8x128xf32>
      %196 = vector.extract_strided_slice %165 {offsets = [0, 120], sizes = [8, 8], strides = [1, 1]} : vector<8x128xf32> to vector<8x8xf32>
      %197 = vector.extract_strided_slice %165 {offsets = [0, 0], sizes = [8, 120], strides = [1, 1]} : vector<8x128xf32> to vector<8x120xf32>
      %198 = tpu.concatenate %196, %197 in 1 : vector<8x8xf32>, vector<8x120xf32> -> vector<8x128xf32>
      %199 = vector.extract_strided_slice %165 {offsets = [0, 8], sizes = [8, 120], strides = [1, 1]} : vector<8x128xf32> to vector<8x120xf32>
      %200 = vector.extract_strided_slice %165 {offsets = [0, 0], sizes = [8, 8], strides = [1, 1]} : vector<8x128xf32> to vector<8x8xf32>
      %201 = tpu.concatenate %199, %200 in 1 : vector<8x120xf32>, vector<8x8xf32> -> vector<8x128xf32>
      %202 = vector.shape_cast %8 : vector<1x128xi1> to vector<1x128xi1>
      %203 = vector.broadcast %202 : vector<1x128xi1> to vector<8x128xi1>
      %204 = arith.select %203, %201, %198 : vector<8x128xi1>, vector<8x128xf32>
      %205 = vector.shape_cast %11 : vector<1x128xi1> to vector<1x128xi1>
      %206 = vector.broadcast %205 : vector<1x128xi1> to vector<8x128xi1>
      %207 = arith.select %206, %198, %201 : vector<8x128xi1>, vector<8x128xf32>
      %208 = vector.extract_strided_slice %183 {offsets = [0, 120], sizes = [8, 8], strides = [1, 1]} : vector<8x128xf32> to vector<8x8xf32>
      %209 = vector.extract_strided_slice %183 {offsets = [0, 0], sizes = [8, 120], strides = [1, 1]} : vector<8x128xf32> to vector<8x120xf32>
      %210 = tpu.concatenate %208, %209 in 1 : vector<8x8xf32>, vector<8x120xf32> -> vector<8x128xf32>
      %211 = vector.extract_strided_slice %183 {offsets = [0, 8], sizes = [8, 120], strides = [1, 1]} : vector<8x128xf32> to vector<8x120xf32>
      %212 = vector.extract_strided_slice %183 {offsets = [0, 0], sizes = [8, 8], strides = [1, 1]} : vector<8x128xf32> to vector<8x8xf32>
      %213 = tpu.concatenate %211, %212 in 1 : vector<8x120xf32>, vector<8x8xf32> -> vector<8x128xf32>
      %214 = vector.shape_cast %8 : vector<1x128xi1> to vector<1x128xi1>
      %215 = vector.broadcast %214 : vector<1x128xi1> to vector<8x128xi1>
      %216 = arith.select %215, %213, %210 : vector<8x128xi1>, vector<8x128xf32>
      %217 = vector.shape_cast %11 : vector<1x128xi1> to vector<1x128xi1>
      %218 = vector.broadcast %217 : vector<1x128xi1> to vector<8x128xi1>
      %219 = arith.select %218, %210, %213 : vector<8x128xi1>, vector<8x128xf32>
      %220 = tpu.concatenate %192, %204, %216, %180, %165, %183, %195, %207, %219 in 0 : vector<8x128xf32>, vector<8x128xf32>, vector<8x128xf32>, vector<8x128xf32>, vector<8x128xf32>, vector<8x128xf32>, vector<8x128xf32>, vector<8x128xf32>, vector<8x128xf32> -> vector<72x128xf32>
      %cst_53 = arith.constant dense<0.000000e+00> : vector<8x128xf32>
      %221 = tpu.matmul %168, %220, %cst_53 {dimension_numbers = #tpu.dot_dimension_numbers<[1], [0], [0], [1], [0, 0, 1, 1], [], []>} : vector<8x72xf32>, vector<72x128xf32>, vector<8x128xf32> -> vector<8x128xf32>
      %222 = vector.broadcast %171 : vector<8x1xf32> to vector<8x128xf32>
      %223 = arith.addf %221, %222 : vector<8x128xf32>
      %224 = arith.addf %arg14, %223 : vector<8x128xf32>
      scf.yield %224 : vector<8x128xf32>
    }
    %c100_i32_22 = arith.constant 100 : i32
    %c0_23 = arith.constant 0 : index
    %c0_24 = arith.constant 0 : index
    %61 = vector.load %arg10[%c0_23, %c0_24] : memref<8x1xf32, #tpu.memory_space<vmem>>, vector<8x1xf32>
    %62 = vector.broadcast %61 : vector<8x1xf32> to vector<8x128xf32>
    %63 = arith.mulf %60, %62 : vector<8x128xf32>
    %cst_25 = arith.constant dense<0.000000e+00> : vector<128xf32>
    %64 = vector.multi_reduction <add>, %63, %cst_25 [0] : vector<8x128xf32> to vector<128xf32>
    %65 = vector.shape_cast %64 : vector<128xf32> to vector<1x128xf32>
    %c0_26 = arith.constant 0 : index
    %c0_27 = arith.constant 0 : index
    %66 = vector.load %arg11[%c0_26, %c0_27] : memref<1x1xf32, #tpu.memory_space<vmem>>, vector<1x1xf32>
    %67 = vector.broadcast %66 : vector<1x1xf32> to vector<1x128xf32>
    %68 = arith.addf %65, %67 : vector<1x128xf32>
    %cst_28 = arith.constant 0.000000e+00 : f32
    %69 = vector.broadcast %cst_28 : f32 to vector<1x128xf32>
    %70 = arith.subf %69, %68 : vector<1x128xf32>
    %71 = math.exp %70 : vector<1x128xf32>
    %cst_29 = arith.constant 1.000000e+00 : f32
    %72 = vector.broadcast %cst_29 : f32 to vector<1x128xf32>
    %73 = arith.addf %72, %71 : vector<1x128xf32>
    %cst_30 = arith.constant 1.000000e+00 : f32
    %74 = vector.broadcast %cst_30 : f32 to vector<1x128xf32>
    %75 = arith.divf %74, %73 : vector<1x128xf32>
    %c0_31 = arith.constant 0 : index
    %c0_32 = arith.constant 0 : index
    %76 = vector.load %arg12[%c0_31, %c0_32] : memref<1x128xf32, #tpu.memory_space<vmem>>, vector<1x128xf32>
    tpu.vector_store %arg12[%c0_31, %c0_32], %75 {strides = array<i32>} : memref<1x128xf32, #tpu.memory_space<vmem>>, vector<1x128xf32>,
    return
  }
}

</mosaic_0001>

<llo_original>
// kernel: segmenter_forward.1
$region0: #{segmenter_forward.1}
  #allocation0 [shape = 'u32[]', space=smem, size = 0x4, offset = 0x4, fixed_abs, tag = 'smem constant byte address 0x4 - core index']
  #allocation1 [shape = 'u32[144,128]{1,0:T(1,128)}', space=vmem, size = 0x12000, scoped, tag = 'internal scratch']
  #allocation2 [shape = 'f32[1,1]{1,0:T(1,128)S(1)}', space=vmem, size = 0x200, scoped, tag = 'scoped memory for segmenter_forward.1']
  %s0 = inlined_call_operand.vmem [shape: f32[1,128], index: 0, kind: input, shape index: {}]
  %s1 = inlined_call_operand.vmem [shape: f32[4,128], index: 1, kind: input, shape index: {}]
  %s2 = inlined_call_operand.vmem [shape: f32[8,9], index: 2, kind: input, shape index: {}]
  %s3 = inlined_call_operand.vmem [shape: f32[8,1], index: 3, kind: input, shape index: {}]
  %s4 = inlined_call_operand.vmem [shape: f32[100,8,72], index: 4, kind: input, shape index: {}]
  %s5 = inlined_call_operand.vmem [shape: f32[100,8,1], index: 5, kind: input, shape index: {}]
  %s6 = inlined_call_operand.vmem [shape: f32[100,8,1], index: 6, kind: input, shape index: {}]
  %s7 = inlined_call_operand.vmem [shape: f32[100,8,1], index: 7, kind: input, shape index: {}]
  %s8 = inlined_call_operand.vmem [shape: f32[100,8,72], index: 8, kind: input, shape index: {}]
  %s9 = inlined_call_operand.vmem [shape: f32[100,8,1], index: 9, kind: input, shape index: {}]
  %s10 = inlined_call_operand.vmem [shape: f32[8,1], index: 10, kind: input, shape index: {}]
  %s11 = inlined_call_operand.<no memory space> [shape: f32[1,1], index: 11, kind: input, shape index: {}]
  %s12 = inlined_call_operand.vmem [shape: f32[1,128], index: 12, kind: output, shape index: {}]
  %s13 = sld [smem:[#allocation0]]
  $region65: #{segmenter_forward.1} parent=0
    _
  %s15 = ssub.s32 1, %s13
  %s16 = scalar_select 0, %s15, %s13
  %v17 = vstv %s11
  %18 = vst [vmem:[#allocation2] sm:$0x1] %v17
  // Predicated region
  $region2: #{segmenter_forward.1} parent=0 // pred_check
    _
  $region3: #{segmenter_forward.1} parent=0 // pred_check_branch
    %20 = sbr.rel (0) target = $region5
  $region4: #{segmenter_forward.1} parent=0 // pred_region
    _
  $region5: #{segmenter_forward.1} parent=0 // pred_fallthru
    _
  // Predicated region
  $region6: #{segmenter_forward.1} parent=0 // pred_check
    _
  $region7: #{segmenter_forward.1} parent=0 // pred_check_branch
    %22 = sbr.rel (0) target = $region9
  $region8: #{segmenter_forward.1} parent=0 // pred_region
    _
  $region9: #{segmenter_forward.1} parent=0 // pred_fallthru
    _
  // Predicated region
  $region10: #{segmenter_forward.1} parent=0 // pred_check
    _
  $region11: #{segmenter_forward.1} parent=0 // pred_check_branch
    %24 = sbr.rel (0) target = $region13
  $region12: #{segmenter_forward.1} parent=0 // pred_region
    _
  $region13: #{segmenter_forward.1} parent=0 // pred_fallthru
    _
  // Predicated region
  $region14: #{segmenter_forward.1} parent=0 // pred_check
    _
  $region15: #{segmenter_forward.1} parent=0 // pred_check_branch
    %26 = sbr.rel (0) target = $region17
  $region16: #{segmenter_forward.1} parent=0 // pred_region
    _
  $region17: #{segmenter_forward.1} parent=0 // pred_fallthru
    _
  // Predicated region
  $region18: #{segmenter_forward.1} parent=0 // pred_check
    _
  $region19: #{segmenter_forward.1} parent=0 // pred_check_branch
    %28 = sbr.rel (0) target = $region21
  $region20: #{segmenter_forward.1} parent=0 // pred_region
    _
  $region21: #{segmenter_forward.1} parent=0 // pred_fallthru
    _
  // Predicated region
  $region22: #{segmenter_forward.1} parent=0 // pred_check
    _
  $region23: #{segmenter_forward.1} parent=0 // pred_check_branch
    %30 = sbr.rel (0) target = $region25
  $region24: #{segmenter_forward.1} parent=0 // pred_region
    _
  $region25: #{segmenter_forward.1} parent=0 // pred_fallthru
    _
  // Predicated region
  $region26: #{segmenter_forward.1} parent=0 // pred_check
    _
  $region27: #{segmenter_forward.1} parent=0 // pred_check_branch
    %32 = sbr.rel (0) target = $region29
  $region28: #{segmenter_forward.1} parent=0 // pred_region
    _
  $region29: #{segmenter_forward.1} parent=0 // pred_fallthru
    _
  // Predicated region
  $region30: #{segmenter_forward.1} parent=0 // pred_check
    _
  $region31: #{segmenter_forward.1} parent=0 // pred_check_branch
    %34 = sbr.rel (0) target = $region33
  $region32: #{segmenter_forward.1} parent=0 // pred_region
    _
  $region33: #{segmenter_forward.1} parent=0 // pred_fallthru
    _
  // Predicated region
  $region34: #{segmenter_forward.1} parent=0 // pred_check
    _
  $region35: #{segmenter_forward.1} parent=0 // pred_check_branch
    %36 = sbr.rel (0) target = $region37
  $region36: #{segmenter_forward.1} parent=0 // pred_region
    _
  $region37: #{segmenter_forward.1} parent=0 // pred_fallthru
    _
  // Predicated region
  $region38: #{segmenter_forward.1} parent=0 // pred_check
    _
  $region39: #{segmenter_forward.1} parent=0 // pred_check_branch
    %38 = sbr.rel (0) target = $region41
  $region40: #{segmenter_forward.1} parent=0 // pred_region
    _
  $region41: #{segmenter_forward.1} parent=0 // pred_fallthru
    _
  // Predicated region
  $region42: #{segmenter_forward.1} parent=0 // pred_check
    _
  $region43: #{segmenter_forward.1} parent=0 // pred_check_branch
    %40 = sbr.rel (0) target = $region45
  $region44: #{segmenter_forward.1} parent=0 // pred_region
    _
  $region45: #{segmenter_forward.1} parent=0 // pred_fallthru
    _
  // Predicated region
  $region46: #{segmenter_forward.1} parent=0 // pred_check
    _
  $region47: #{segmenter_forward.1} parent=0 // pred_check_branch
    %42 = sbr.rel (0) target = $region49
  $region48: #{segmenter_forward.1} parent=0 // pred_region
    _
  $region49: #{segmenter_forward.1} parent=0 // pred_fallthru
    _
  %v43 = vld [vmem:[%s1] sm:$0x1]
  %vm44 = vcmp.gt.f32.partialorder %v43, 0.5
  %v45 = vld [vmem:[%s1 + $0x1] sm:$0x1]
  %vm46 = vcmp.gt.f32.partialorder %v45, 0.5
  %v47 = vld [vmem:[%s1 + $0x2] sm:$0x1]
  %vm48 = vcmp.gt.f32.partialorder %v47, 0.5
  %v49 = vld [vmem:[%s1 + $0x3] sm:$0x1]
  %vm50 = vcmp.gt.f32.partialorder %v49, 0.5
  %v51 = vld [vmem:[%s0] sm:$0x1]
  %v52 = vld [vmem:[%s2] sm:$0xff]
  %v53 = vld [vmem:[%s3] sm:$0xff]
  %v55 = vlaneseq
  %v56 = vshrl.u32 %v55, 7
  %v57 = vsub.s32 0, %v56
  %v58 = vrot.slane %v51, %v57
  %59 = vrot.lane.b32.xlu0 %v58, 1
  %v60 = vpop.permute.xlu0 %59
  %62 = vrot.lane.b32.xlu0 %v58, 127
  %v63 = vpop.permute.xlu0 %62
  %v65 = vsel %vm44, 0.0, %v60
  %v66 = vsel %vm46, 0.0, %v63
  %68 = vrot.lane.b32.xlu0 %v65, 8
  %v69 = vpop.permute.xlu0 %68
  %71 = vrot.lane.b32.xlu0 %v65, 120
  %v72 = vpop.permute.xlu0 %71
  %v74 = vsel %vm48, 0.0, %v69
  %v75 = vsel %vm50, 0.0, %v72
  %76 = vrot.lane.b32.xlu0 %v58, 8
  %v77 = vpop.permute.xlu0 %76
  %79 = vrot.lane.b32.xlu0 %v58, 120
  %v80 = vpop.permute.xlu0 %79
  %v82 = vsel %vm48, 0.0, %v77
  %v83 = vsel %vm50, 0.0, %v80
  %85 = vrot.lane.b32.xlu0 %v66, 8
  %v86 = vpop.permute.xlu0 %85
  %88 = vrot.lane.b32.xlu0 %v66, 120
  %v89 = vpop.permute.xlu0 %88
  %v91 = vsel %vm48, 0.0, %v86
  %v92 = vsel %vm50, 0.0, %v89
  %v94 = vrot.slane %v82, 7
  %v97 = vrot.slane %v91, 6
  %v99 = vrot.slane %v65, 5
  %v102 = vrot.slane %v66, 3
  %v105 = vrot.slane %v75, 2
  %v108 = vrot.slane %v83, 1
  %vm110 = vcmask 1040384
  %v111 = vsel %vm110, %v74, %v94
  %vm112 = vcmask 1041408
  %v113 = vsel %vm112, %v111, %v97
  %vm114 = vcmask 1042432
  %v115 = vsel %vm114, %v113, %v99
  %vm116 = vcmask 1043456
  %v117 = vsel %vm116, %v115, %v58
  %vm118 = vcmask 1044480
  %v119 = vsel %vm118, %v117, %v102
  %vm120 = vcmask 1045504
  %v121 = vsel %vm120, %v119, %v105
  %vm122 = vcmask 1046528
  %v123 = vsel %vm122, %v121, %v108
  %125 = vset.pattern.permute.xlu0 0
  %126 = vperm.xlu0 %125, %v53
  %v127 = vpop.permute.xlu0 %126
  %vm129 = vcmask 72704
  %v131 = vsel %vm129, %v52, 0
  %v134 = vsel %vm110, %v92, 0
  %136 = vmatprep.subr.mxu0 0.0
  %137 = vmatpush1.msra.mxu0 %v123
  %138 = vmatprep.subr.mxu0 0.0
  %139 = vmatpush1.msra.mxu0 %v134
  %140 = vmatprep.subr.mxu0 0.0
  %141 = vmatpush1.msra.mxu0 0.0
  %142 = vmatprep.subr.mxu0 0.0
  %143 = vmatpush1.msra.mxu0 0.0
  %144 = vmatprep.subr.mxu0 0.0
  %145 = vmatpush1.msra.mxu0 0.0
  %146 = vmatprep.subr.mxu0 0.0
  %147 = vmatpush1.msra.mxu0 0.0
  %148 = vmatprep.subr.mxu0 0.0
  %149 = vmatpush1.msra.mxu0 0.0
  %150 = vmatprep.subr.mxu0 0.0
  %151 = vmatpush1.msra.mxu0 0.0
  %152 = vmatprep.subr.mxu0 0.0
  %153 = vmatpush1.msra.mxu0 0.0
  %154 = vmatprep.subr.mxu0 0.0
  %155 = vmatpush1.msra.mxu0 0.0
  %156 = vmatprep.subr.mxu0 0.0
  %157 = vmatpush1.msra.mxu0 0.0
  %158 = vmatprep.subr.mxu0 0.0
  %159 = vmatpush1.msra.mxu0 0.0
  %160 = vmatprep.subr.mxu0 0.0
  %161 = vmatpush1.msra.mxu0 0.0
  %162 = vmatprep.subr.mxu0 0.0
  %163 = vmatpush1.msra.mxu0 0.0
  %164 = vmatprep.subr.mxu0 0.0
  %165 = vmatpush1.msra.mxu0 0.0
  %166 = vmatprep.subr.mxu0 0.0
  %167 = vmatpush1.msra.mxu0 0.0
  %168 = vmatprep.subr.mxu0 0.0
  %169 = vmatpush1.msra.mxu0 0.0
  %170 = vmatprep.subr.mxu0 0.0
  %171 = vmatpush1.msra.mxu0 0.0
  %172 = vmatprep.subr.mxu0 0.0
  %173 = vmatpush1.msra.mxu0 0.0
  %174 = vmatprep.subr.mxu0 0.0
  %175 = vmatpush1.msra.mxu0 0.0
  %176 = vmatprep.subr.mxu0 0.0
  %177 = vmatpush1.msra.mxu0 0.0
  %178 = vmatprep.subr.mxu0 0.0
  %179 = vmatpush1.msra.mxu0 0.0
  %180 = vmatprep.subr.mxu0 0.0
  %181 = vmatpush1.msra.mxu0 0.0
  %182 = vmatprep.subr.mxu0 0.0
  %183 = vmatpush1.msra.mxu0 0.0
  %184 = vmatprep.subr.mxu0 0.0
  %185 = vmatpush1.msra.mxu0 0.0
  %186 = vmatprep.subr.mxu0 0.0
  %187 = vmatpush1.msra.mxu0 0.0
  %188 = vmatprep.subr.mxu0 0.0
  %189 = vmatpush1.msra.mxu0 0.0
  %190 = vmatprep.subr.mxu0 0.0
  %191 = vmatpush1.msra.mxu0 0.0
  %192 = vmatprep.subr.mxu0 0.0
  %193 = vmatpush1.msra.mxu0 0.0
  %194 = vmatprep.subr.mxu0 0.0
  %195 = vmatpush1.msra.mxu0 0.0
  %196 = vmatprep.subr.mxu0 0.0
  %197 = vmatpush1.msra.mxu0 0.0
  %198 = vmatprep.subr.mxu0 0.0
  %199 = vmatpush1.msra.mxu0 0.0
  %200 = vmatprep.mubr.f32.mxu0 0.0
  %201 = vmatmul.mubr.f32.gmra.mrb[0].mxu0 %v131
  %v202 = vpop.f32.mrb[0].mxu0
  %v203 = vadd.f32 %v127, %v202
  %v204 = vpop.f32.mrb[0].mxu0
  %205 = vdwg.mxu0
  loop: start=0, step=1, limit=100
  $region50: #{segmenter_forward.1} parent=0 // loop_pre_header
    _
  $region51: #{segmenter_forward.1} parent=0 // loop_header
    %s207 = sphi 0, %s211
    %p208 = scmp.ge.s32.totalorder %s207, 100
    %v212 = vphi %v203, %v505
  $region52: #{segmenter_forward.1} parent=0 // loop_header_branch
    %210 = sbr.rel (%p208) target = $region56
  $region53: #{segmenter_forward.1} parent=0 // loop_body
    %s213 = smul.u32 %s207, 8
    %s214 = scalar_lea.vmem %s4, %s213
    %v215 = vld [vmem:[%s214] sm:$0xff]
    %s216 = scalar_lea.vmem %s5, %s213
    %v217 = vld [vmem:[%s216] sm:$0xff]
    %219 = vrot.lane.b32.xlu0 %v212, 1
    %v220 = vpop.permute.xlu0 %219
    %222 = vrot.lane.b32.xlu0 %v212, 127
    %v223 = vpop.permute.xlu0 %222
    %v225 = vsel %vm44, 1, 0
    %v226 = vlaneseq
    %v227 = vshrl.u32 %v226, 7
    %v228 = vsub.s32 0, %v227
    %v229 = vrot.slane %v225, %v228
    %vm230 = vcmp.eq.s32.totalorder %v229, 1
    %v231 = vsel %vm230, %v223, %v220
    %v232 = vsel %vm46, 1, 0
    %v233 = vlaneseq
    %v234 = vshrl.u32 %v233, 7
    %v235 = vsub.s32 0, %v234
    %v236 = vrot.slane %v232, %v235
    %vm237 = vcmp.eq.s32.totalorder %v236, 1
    %v238 = vsel %vm237, %v220, %v223
    %240 = vrot.lane.b32.xlu0 %v231, 8
    %v241 = vpop.permute.xlu0 %240
    %243 = vrot.lane.b32.xlu0 %v231, 120
    %v244 = vpop.permute.xlu0 %243
    %v246 = vsel %vm48, 1, 0
    %v247 = vlaneseq
    %v248 = vshrl.u32 %v247, 7
    %v249 = vsub.s32 0, %v248
    %v250 = vrot.slane %v246, %v249
    %vm251 = vcmp.eq.s32.totalorder %v250, 1
    %v252 = vsel %vm251, %v244, %v241
    %v253 = vsel %vm50, 1, 0
    %v254 = vlaneseq
    %v255 = vshrl.u32 %v254, 7
    %v256 = vsub.s32 0, %v255
    %v257 = vrot.slane %v253, %v256
    %vm258 = vcmp.eq.s32.totalorder %v257, 1
    %v259 = vsel %vm258, %v241, %v244
    %260 = vrot.lane.b32.xlu0 %v212, 8
    %v261 = vpop.permute.xlu0 %260
    %263 = vrot.lane.b32.xlu0 %v212, 120
    %v264 = vpop.permute.xlu0 %263
    %v266 = vsel %vm251, %v264, %v261
    %v267 = vsel %vm258, %v261, %v264
    %269 = vrot.lane.b32.xlu0 %v238, 8
    %v270 = vpop.permute.xlu0 %269
    %272 = vrot.lane.b32.xlu0 %v238, 120
    %v273 = vpop.permute.xlu0 %272
    %v275 = vsel %vm251, %v273, %v270
    %v276 = vsel %vm258, %v270, %v273
    %278 = vset.pattern.permute.xlu0 0
    %279 = vperm.xlu0 %278, %v217
    %v280 = vpop.permute.xlu0 %279
    %vm282 = vcmask 588800
    %v284 = vsel %vm282, %v215, 0
    %286 = vmatprep.subr.mxu0 0.0
    %287 = vmatpush1.msra.mxu0 %v252
    %288 = vmatprep.subr.mxu0 0.0
    %289 = vmatpush1.msra.mxu0 %v266
    %290 = vmatprep.subr.mxu0 0.0
    %291 = vmatpush1.msra.mxu0 %v275
    %292 = vmatprep.subr.mxu0 0.0
    %293 = vmatpush1.msra.mxu0 %v231
    %294 = vmatprep.subr.mxu0 0.0
    %295 = vmatpush1.msra.mxu0 %v212
    %296 = vmatprep.subr.mxu0 0.0
    %297 = vmatpush1.msra.mxu0 %v238
    %298 = vmatprep.subr.mxu0 0.0
    %299 = vmatpush1.msra.mxu0 %v259
    %300 = vmatprep.subr.mxu0 0.0
    %301 = vmatpush1.msra.mxu0 %v267
    %302 = vmatprep.subr.mxu0 0.0
    %303 = vmatpush1.msra.mxu0 %v276
    %304 = vmatprep.subr.mxu0 0.0
    %305 = vmatpush1.msra.mxu0 0.0
    %306 = vmatprep.subr.mxu0 0.0
    %307 = vmatpush1.msra.mxu0 0.0
    %308 = vmatprep.subr.mxu0 0.0
    %309 = vmatpush1.msra.mxu0 0.0
    %310 = vmatprep.subr.mxu0 0.0
    %311 = vmatpush1.msra.mxu0 0.0
    %312 = vmatprep.subr.mxu0 0.0
    %313 = vmatpush1.msra.mxu0 0.0
    %314 = vmatprep.subr.mxu0 0.0
    %315 = vmatpush1.msra.mxu0 0.0
    %316 = vmatprep.subr.mxu0 0.0
    %317 = vmatpush1.msra.mxu0 0.0
    %318 = vmatprep.subr.mxu0 0.0
    %319 = vmatpush1.msra.mxu0 0.0
    %320 = vmatprep.subr.mxu0 0.0
    %321 = vmatpush1.msra.mxu0 0.0
    %322 = vmatprep.subr.mxu0 0.0
    %323 = vmatpush1.msra.mxu0 0.0
    %324 = vmatprep.subr.mxu0 0.0
    %325 = vmatpush1.msra.mxu0 0.0
    %326 = vmatprep.subr.mxu0 0.0
    %327 = vmatpush1.msra.mxu0 0.0
    %328 = vmatprep.subr.mxu0 0.0
    %329 = vmatpush1.msra.mxu0 0.0
    %330 = vmatprep.subr.mxu0 0.0
    %331 = vmatpush1.msra.mxu0 0.0
    %332 = vmatprep.subr.mxu0 0.0
    %333 = vmatpush1.msra.mxu0 0.0
    %334 = vmatprep.subr.mxu0 0.0
    %335 = vmatpush1.msra.mxu0 0.0
    %336 = vmatprep.subr.mxu0 0.0
    %337 = vmatpush1.msra.mxu0 0.0
    %338 = vmatprep.subr.mxu0 0.0
    %339 = vmatpush1.msra.mxu0 0.0
    %340 = vmatprep.subr.mxu0 0.0
    %341 = vmatpush1.msra.mxu0 0.0
    %342 = vmatprep.subr.mxu0 0.0
    %343 = vmatpush1.msra.mxu0 0.0
    %344 = vmatprep.subr.mxu0 0.0
    %345 = vmatpush1.msra.mxu0 0.0
    %346 = vmatprep.subr.mxu0 0.0
    %347 = vmatpush1.msra.mxu0 0.0
    %348 = vmatprep.subr.mxu0 0.0
    %349 = vmatpush1.msra.mxu0 0.0
    %350 = vmatprep.mubr.f32.mxu0 0.0
    %351 = vmatmul.mubr.f32.gmra.mrb[0].mxu0 %v284
    %v352 = vpop.f32.mrb[0].mxu0
    %v353 = vadd.f32 %v280, %v352
    %v354 = vpop.f32.mrb[0].mxu0
    %355 = vdwg.mxu0
    %356 = vadd.xlane.f32.xlu0 %v353
    %v357 = vpop.xlane.xlu0 %356
    %v358 = vmul.f32 %v357, 0.0078125
    %v359 = vmul.f32 %v353, %v353
    %360 = vadd.xlane.f32.xlu0 %v359
    %v361 = vpop.xlane.xlu0 %360
    %v362 = vmul.f32 %v361, 0.0078125
    %v363 = vmul.f32 %v358, %v358
    %v364 = vsub.f32 %v362, %v363
    %v365 = vmax.f32 %v364, 0.0
    %v366 = vadd.f32 %v365, 1e-05
    %v367 = vrsqrt.pop %v366
    %s368 = scalar_lea.vmem %s6, %s213
    %v369 = vld [vmem:[%s368] sm:$0xff]
    %v370 = vmul.f32 %v367, %v369
    %s371 = scalar_lea.vmem %s7, %s213
    %v372 = vld [vmem:[%s371] sm:$0xff]
    %v373 = vmul.f32 %v358, %v370
    %v374 = vsub.f32 %v372, %v373
    %376 = vset.pattern.permute.xlu0 0
    %377 = vperm.xlu0 %376, %v370
    %v378 = vpop.permute.xlu0 %377
    %v380 = vmul.f32 %v353, %v378
    %382 = vset.pattern.permute.xlu0 0
    %383 = vperm.xlu0 %382, %v374
    %v384 = vpop.permute.xlu0 %383
    %v386 = vadd.f32 %v380, %v384
    %v387 = vmax.f32 %v386, 0.0
    %s388 = scalar_lea.vmem %s8, %s213
    %v389 = vld [vmem:[%s388] sm:$0xff]
    %s390 = scalar_lea.vmem %s9, %s213
    %v391 = vld [vmem:[%s390] sm:$0xff]
    %393 = vrot.lane.b32.xlu0 %v387, 1
    %v394 = vpop.permute.xlu0 %393
    %396 = vrot.lane.b32.xlu0 %v387, 127
    %v397 = vpop.permute.xlu0 %396
    %v399 = vsel %vm230, %v397, %v394
    %v400 = vsel %vm237, %v394, %v397
    %402 = vrot.lane.b32.xlu0 %v399, 8
    %v403 = vpop.permute.xlu0 %402
    %405 = vrot.lane.b32.xlu0 %v399, 120
    %v406 = vpop.permute.xlu0 %405
    %v408 = vsel %vm251, %v406, %v403
    %v409 = vsel %vm258, %v403, %v406
    %410 = vrot.lane.b32.xlu0 %v387, 8
    %v411 = vpop.permute.xlu0 %410
    %413 = vrot.lane.b32.xlu0 %v387, 120
    %v414 = vpop.permute.xlu0 %413
    %v416 = vsel %vm251, %v414, %v411
    %v417 = vsel %vm258, %v411, %v414
    %419 = vrot.lane.b32.xlu0 %v400, 8
    %v420 = vpop.permute.xlu0 %419
    %422 = vrot.lane.b32.xlu0 %v400, 120
    %v423 = vpop.permute.xlu0 %422
    %v425 = vsel %vm251, %v423, %v420
    %v426 = vsel %vm258, %v420, %v423
    %428 = vset.pattern.permute.xlu0 0
    %429 = vperm.xlu0 %428, %v391
    %v430 = vpop.permute.xlu0 %429
    %v433 = vsel %vm282, %v389, 0
    %435 = vmatprep.subr.mxu0 0.0
    %436 = vmatpush1.msra.mxu0 %v408
    %437 = vmatprep.subr.mxu0 0.0
    %438 = vmatpush1.msra.mxu0 %v416
    %439 = vmatprep.subr.mxu0 0.0
    %440 = vmatpush1.msra.mxu0 %v425
    %441 = vmatprep.subr.mxu0 0.0
    %442 = vmatpush1.msra.mxu0 %v399
    %443 = vmatprep.subr.mxu0 0.0
    %444 = vmatpush1.msra.mxu0 %v387
    %445 = vmatprep.subr.mxu0 0.0
    %446 = vmatpush1.msra.mxu0 %v400
    %447 = vmatprep.subr.mxu0 0.0
    %448 = vmatpush1.msra.mxu0 %v409
    %449 = vmatprep.subr.mxu0 0.0
    %450 = vmatpush1.msra.mxu0 %v417
    %451 = vmatprep.subr.mxu0 0.0
    %452 = vmatpush1.msra.mxu0 %v426
    %453 = vmatprep.subr.mxu0 0.0
    %454 = vmatpush1.msra.mxu0 0.0
    %455 = vmatprep.subr.mxu0 0.0
    %456 = vmatpush1.msra.mxu0 0.0
    %457 = vmatprep.subr.mxu0 0.0
    %458 = vmatpush1.msra.mxu0 0.0
    %459 = vmatprep.subr.mxu0 0.0
    %460 = vmatpush1.msra.mxu0 0.0
    %461 = vmatprep.subr.mxu0 0.0
    %462 = vmatpush1.msra.mxu0 0.0
    %463 = vmatprep.subr.mxu0 0.0
    %464 = vmatpush1.msra.mxu0 0.0
    %465 = vmatprep.subr.mxu0 0.0
    %466 = vmatpush1.msra.mxu0 0.0
    %467 = vmatprep.subr.mxu0 0.0
    %468 = vmatpush1.msra.mxu0 0.0
    %469 = vmatprep.subr.mxu0 0.0
    %470 = vmatpush1.msra.mxu0 0.0
    %471 = vmatprep.subr.mxu0 0.0
    %472 = vmatpush1.msra.mxu0 0.0
    %473 = vmatprep.subr.mxu0 0.0
    %474 = vmatpush1.msra.mxu0 0.0
    %475 = vmatprep.subr.mxu0 0.0
    %476 = vmatpush1.msra.mxu0 0.0
    %477 = vmatprep.subr.mxu0 0.0
    %478 = vmatpush1.msra.mxu0 0.0
    %479 = vmatprep.subr.mxu0 0.0
    %480 = vmatpush1.msra.mxu0 0.0
    %481 = vmatprep.subr.mxu0 0.0
    %482 = vmatpush1.msra.mxu0 0.0
    %483 = vmatprep.subr.mxu0 0.0
    %484 = vmatpush1.msra.mxu0 0.0
    %485 = vmatprep.subr.mxu0 0.0
    %486 = vmatpush1.msra.mxu0 0.0
    %487 = vmatprep.subr.mxu0 0.0
    %488 = vmatpush1.msra.mxu0 0.0
    %489 = vmatprep.subr.mxu0 0.0
    %490 = vmatpush1.msra.mxu0 0.0
    %491 = vmatprep.subr.mxu0 0.0
    %492 = vmatpush1.msra.mxu0 0.0
    %493 = vmatprep.subr.mxu0 0.0
    %494 = vmatpush1.msra.mxu0 0.0
    %495 = vmatprep.subr.mxu0 0.0
    %496 = vmatpush1.msra.mxu0 0.0
    %497 = vmatprep.subr.mxu0 0.0
    %498 = vmatpush1.msra.mxu0 0.0
    %499 = vmatprep.mubr.f32.mxu0 0.0
    %500 = vmatmul.mubr.f32.gmra.mrb[0].mxu0 %v433
    %v501 = vpop.f32.mrb[0].mxu0
    %v502 = vadd.f32 %v430, %v501
    %v503 = vpop.f32.mrb[0].mxu0
    %504 = vdwg.mxu0
    %v505 = vadd.f32 %v212, %v502
  $region54: #{segmenter_forward.1} parent=0 // loop_footer
    %s211 = sadd.s32 1, %s207
  $region55: #{segmenter_forward.1} parent=0 // loop_footer_branch
    %206 = sbr.rel target = $region51
  $region56: #{segmenter_forward.1} parent=0 // loop_exit
    _
  %v506 = vld [vmem:[%s10] sm:$0xff]
  %508 = vset.pattern.permute.xlu0 0
  %509 = vperm.xlu0 %508, %v506
  %v510 = vpop.permute.xlu0 %509
  %v512 = vmul.f32 %v212, %v510
  %v513 = vrot.slane %v512, 4
  %v514 = vadd.f32 %v512, %v513
  %v515 = vrot.slane %v514, 2
  %v516 = vadd.f32 %v514, %v515
  %v517 = vrot.slane %v516, 1
  %v518 = vadd.f32 %v516, %v517
  %v519 = vld [vmem:[#allocation2] sm:$0x1]
  %521 = vset.pattern.permute.xlu0 0
  %522 = vperm.xlu0 %521, %v519
  %v523 = vpop.permute.xlu0 %522
  %v525 = vlaneseq
  %v526 = vshrl.u32 %v525, 7
  %v527 = vsub.s32 0, %v526
  %v528 = vrot.slane %v523, %v527
  %v529 = vadd.f32 %v518, %v528
  %v530 = vsub.f32 0.0, %v529
  %v531 = vmul.f32 %v530, 1.442695
  %v532 = vpow.pop %v531
  %v533 = vadd.f32 %v532, 1.0
  %v534 = vrcp.pop %v533
  %v535 = vmul.f32 1.0, %v534
  %536 = vst [vmem:[%s12] sm:$0x1] %v535
  // Predicated region
  $region57: #{segmenter_forward.1} parent=0 // pred_check
    _
  $region58: #{segmenter_forward.1} parent=0 // pred_check_branch
    %538 = sbr.rel (0) target = $region60
  $region59: #{segmenter_forward.1} parent=0 // pred_region
    _
  $region60: #{segmenter_forward.1} parent=0 // pred_fallthru
    _
  // Predicated region
  $region61: #{segmenter_forward.1} parent=0 // pred_check
    _
  $region62: #{segmenter_forward.1} parent=0 // pred_check_branch
    %540 = sbr.rel (0) target = $region64
  $region63: #{segmenter_forward.1} parent=0 // pred_region
    _
  $region64: #{segmenter_forward.1} parent=0 // pred_fallthru
    _

</llo_original>
